<compile_context>
chip_gen: v6e
topology: v6e:2x2x1
jax: 0.10.0
libtpu: 0.0.40
codegen_flags: <defaults>
</compile_context>

<pallas_src>
import jax
import jax.numpy as jnp
from jax.experimental import pallas as pl
from jax.experimental.pallas import tpu as pltpu


def _lrelu(v, slope=0.2):
    return jnp.where(v > 0, v, slope * v)


def mlp_critic_kernel(x_ref, att_ref,
                      w1x_ref, w1a_ref, b1_ref,   # fc1 split: (res,ndh),(att,ndh),(1,ndh)
                      w2_ref, b2_ref,             # fc2: (ndh,ndh),(1,ndh)
                      w3_ref, b3_ref,             # fc3: (ndh,ndh),(1,ndh)
                      w4_ref, b4_ref,             # fc4 row: (1,ndh) f32, (1,1) f32
                      o_ref):                     # (1, batch_tile) f32, lane-dense
    f32 = jnp.float32
    x = x_ref[...]        # (bm, res)  bf16
    a = att_ref[...]      # (bm, att)  bf16

    # fc1(cat(x, att)) without materializing the concat: two MXU dots summed.
    h = (jnp.dot(x, w1x_ref[...], preferred_element_type=f32)
         + jnp.dot(a, w1a_ref[...], preferred_element_type=f32)
         + b1_ref[...])
    h = _lrelu(h)

    h = jnp.dot(h.astype(w2_ref.dtype), w2_ref[...], preferred_element_type=f32) + b2_ref[...]
    h = _lrelu(h)

    h = jnp.dot(h.astype(w3_ref.dtype), w3_ref[...], preferred_element_type=f32) + b3_ref[...]
    h = _lrelu(h)

    # fc4: (1, ndh) @ (ndh, bm) -> (1, bm). Lane-dense result row, written as
    # an unmasked store (batch lives on the lane axis of the output block).
    out_row = jnp.dot(w4_ref[...], h.T, preferred_element_type=f32) + b4_ref[...]
    o_ref[...] = out_row.astype(o_ref.dtype)


def mlp_3hl_critic(x, att, params, *, batch_tile=None):
    """x: (B, resSize) f32, att: (B, attSize) f32 -> (B, 1) f32."""
    B, res = x.shape
    Ba, attd = att.shape
    assert Ba == B
    w1x, w1a = params["w1x"], params["w1a"]
    b1, w2, b2, w3, b3, w4, b4 = (params["b1"], params["w2"], params["b2"],
                                  params["w3"], params["b3"], params["w4"],
                                  params["b4"])
    ndh = w2.shape[0]
    assert w1x.shape == (res, ndh) and w1a.shape == (attd, ndh)
    assert w4.shape == (1, ndh)

    if batch_tile is None:
        # Single grid step by default (best for single-TC v5e/v6e and for any
        # small B). Only split 2-way for v7x megacore when each half keeps the
        # MXU fed (>=256 rows) and stays 128-aligned; cap huge tiles for VMEM.
        if B >= 512 and B % 256 == 0:
            batch_tile = B // 2
            while batch_tile > 4096 and batch_tile % 256 == 0:
                batch_tile //= 2
        else:
            batch_tile = B
    assert B % batch_tile == 0
    grid = (B // batch_tile,)
    if grid[0] > 1:
        # Lane-dense output blocks and aligned activation tiles need 128-mult.
        assert batch_tile % 128 == 0

    # Stream activations as bf16 (halves the only per-step HBM traffic);
    # f32 accumulation is preserved inside the kernel.
    x_b = x.astype(jnp.bfloat16)
    att_b = att.astype(jnp.bfloat16)

    const2d = lambda shp: pl.BlockSpec(shp, lambda i: (0, 0))

    out2d = pl.pallas_call(
        mlp_critic_kernel,
        out_shape=jax.ShapeDtypeStruct((1, B), jnp.float32),
        grid_spec=pltpu.PrefetchScalarGridSpec(
            num_scalar_prefetch=0,
            grid=grid,
            in_specs=[
                pl.BlockSpec((batch_tile, res), lambda i: (i, 0)),    # x
                pl.BlockSpec((batch_tile, attd), lambda i: (i, 0)),   # att
                const2d((res, ndh)), const2d((attd, ndh)), const2d((1, ndh)),  # fc1
                const2d((ndh, ndh)), const2d((1, ndh)),                        # fc2
                const2d((ndh, ndh)), const2d((1, ndh)),                        # fc3
                const2d((1, ndh)), const2d((1, 1)),                            # fc4
            ],
            out_specs=pl.BlockSpec((1, batch_tile), lambda i: (0, i)),
        ),
        compiler_params=pltpu.CompilerParams(
            dimension_semantics=("parallel",)),
    )(x_b, att_b, w1x, w1a, b1, w2, b2, w3, b3, w4, b4)

    return out2d.reshape(B, 1)


def make_params(key, res, attd, ndh, *, bias_std=0.02):
    """PyTorch weights_init: Linear weight ~ N(0, 0.02), bias = 0.
    fc1..fc3 weights are stored pre-transposed (in, out) in bf16 (dots still
    accumulate f32); fc4 is kept as a tiny f32 row (1, ndh). Biases here are
    small NONZERO values so the self-test exercises the bias-add path; the
    real module initializes them to 0 (forward semantics are init-independent).
    NOTE: bf16 weights/activations deviate from the f32 PyTorch module by up
    to ~1e-2 relative — acceptable for a WGAN critic; drop the casts for f32.
    """
    ks = jax.random.split(key, 8)
    std = 0.02

    def lin_w(k, in_dim, out_dim):
        # torch Linear.weight has shape (out, in); store transposed (in, out).
        return (jax.random.normal(k, (out_dim, in_dim), jnp.float32) * std).T

    w1 = lin_w(ks[0], res + attd, ndh)   # rows [0:res) <- x, rows [res:) <- att
    w4 = lin_w(ks[6], ndh, 1)            # (ndh, 1) f32
    return {
        "w1x": w1[:res].astype(jnp.bfloat16),
        "w1a": w1[res:].astype(jnp.bfloat16),
        "b1": jax.random.normal(ks[1], (1, ndh), jnp.float32) * bias_std,
        "w2": lin_w(ks[2], ndh, ndh).astype(jnp.bfloat16),
        "b2": jax.random.normal(ks[3], (1, ndh), jnp.float32) * bias_std,
        "w3": lin_w(ks[4], ndh, ndh).astype(jnp.bfloat16),
        "b3": jax.random.normal(ks[5], (1, ndh), jnp.float32) * bias_std,
        "w4": w4.T,                                     # (1, ndh) f32 row
        "b4": jax.random.normal(ks[7], (1, 1), jnp.float32) * bias_std,
    }


def reference(x, att, p):
    """Pure-JAX reference of the PyTorch forward with matching precision
    (bf16 weights/activations where the kernel uses them, f32 accumulation)."""
    f32 = jnp.float32

    def dot(a, w):
        return jnp.dot(a.astype(w.dtype), w, preferred_element_type=f32)

    lrelu = lambda v: jnp.where(v > 0, v, 0.2 * v)
    xb = x.astype(jnp.bfloat16)
    ab = att.astype(jnp.bfloat16)
    h = lrelu(dot(xb, p["w1x"]) + dot(ab, p["w1a"]) + p["b1"])
    h = lrelu(dot(h, p["w2"]) + p["b2"])
    h = lrelu(dot(h, p["w3"]) + p["b3"])
    return dot(h, p["w4"].T) + p["b4"]          # (B, 1)


if __name__ == "__main__":
    B, RES, ATT, NDH = 16, 128, 64, 128   # batch, resSize, attSize, ndh
    key = jax.random.PRNGKey(0)
    kx, ka, kp = jax.random.split(key, 3)

    x = jax.random.normal(kx, (B, RES), jnp.float32)
    att = jax.random.normal(ka, (B, ATT), jnp.float32)
    params = make_params(kp, RES, ATT, NDH)

    out = mlp_3hl_critic(x, att, params)
    out = jax.block_until_ready(out)

    ref = reference(x, att, params)
    assert out.shape == (B, 1)
    err = float(jnp.max(jnp.abs(out - ref)))
    assert err < 1e-4, f"mismatch vs reference: {err}"
    print("KERNEL_OK")
</pallas_src>

<mosaic_0001>
module attributes {stable_mosaic.version = 11 : i64} {
  func.func @mlp_critic_kernel(%arg0: i32, %arg1: memref<16x128xbf16, #tpu.memory_space<vmem>>, %arg2: memref<16x64xbf16, #tpu.memory_space<vmem>>, %arg3: memref<128x128xbf16, #tpu.memory_space<vmem>>, %arg4: memref<64x128xbf16, #tpu.memory_space<vmem>>, %arg5: memref<1x128xf32, #tpu.memory_space<vmem>>, %arg6: memref<128x128xbf16, #tpu.memory_space<vmem>>, %arg7: memref<1x128xf32, #tpu.memory_space<vmem>>, %arg8: memref<128x128xbf16, #tpu.memory_space<vmem>>, %arg9: memref<1x128xf32, #tpu.memory_space<vmem>>, %arg10: memref<1x128xf32, #tpu.memory_space<vmem>>, %arg11: memref<1x1xf32, #tpu.memory_space<vmem>>, %arg12: memref<1x16xf32, #tpu.memory_space<vmem>>) attributes {dimension_semantics = [#tpu.dimension_semantics<parallel>], iteration_bounds = array<i64: 1>, scalar_prefetch = 0 : i64, scratch_operands = 0 : i64, tpu.core_type = #tpu.core_type<tc>, window_params = [{transform_indices = @transform_0, window_bounds = array<i64: 16, 128>}, {transform_indices = @transform_1, window_bounds = array<i64: 16, 64>}, {pipeline_mode = #tpu.pipeline_mode<synchronous>, transform_indices = @transform_2, window_bounds = array<i64: 128, 128>}, {pipeline_mode = #tpu.pipeline_mode<synchronous>, transform_indices = @transform_3, window_bounds = array<i64: 64, 128>}, {pipeline_mode = #tpu.pipeline_mode<synchronous>, transform_indices = @transform_4, window_bounds = array<i64: 1, 128>}, {pipeline_mode = #tpu.pipeline_mode<synchronous>, transform_indices = @transform_5, window_bounds = array<i64: 128, 128>}, {pipeline_mode = #tpu.pipeline_mode<synchronous>, transform_indices = @transform_6, window_bounds = array<i64: 1, 128>}, {pipeline_mode = #tpu.pipeline_mode<synchronous>, transform_indices = @transform_7, window_bounds = array<i64: 128, 128>}, {pipeline_mode = #tpu.pipeline_mode<synchronous>, transform_indices = @transform_8, window_bounds = array<i64: 1, 128>}, {pipeline_mode = #tpu.pipeline_mode<synchronous>, transform_indices = @transform_9, window_bounds = array<i64: 1, 128>}, {pipeline_mode = #tpu.pipeline_mode<synchronous>, transform_indices = @transform_10, window_bounds = array<i64: 1, 1>}, {transform_indices = @transform_11, window_bounds = array<i64: 1, 16>}]} {
    %c0 = arith.constant 0 : index
    %c0_0 = arith.constant 0 : index
    %0 = vector.load %arg1[%c0, %c0_0] : memref<16x128xbf16, #tpu.memory_space<vmem>>, vector<16x128xbf16>
    %c0_1 = arith.constant 0 : index
    %c0_2 = arith.constant 0 : index
    %1 = vector.load %arg2[%c0_1, %c0_2] : memref<16x64xbf16, #tpu.memory_space<vmem>>, vector<16x64xbf16>
    %c0_3 = arith.constant 0 : index
    %c0_4 = arith.constant 0 : index
    %2 = vector.load %arg3[%c0_3, %c0_4] : memref<128x128xbf16, #tpu.memory_space<vmem>>, vector<128x128xbf16>
    %cst = arith.constant dense<0.000000e+00> : vector<16x128xf32>
    %3 = tpu.matmul %0, %2, %cst {dimension_numbers = #tpu.dot_dimension_numbers<[1], [0], [0], [1], [0, 0, 1, 1], [], []>} : vector<16x128xbf16>, vector<128x128xbf16>, vector<16x128xf32> -> vector<16x128xf32>
    %c0_5 = arith.constant 0 : index
    %c0_6 = arith.constant 0 : index
    %4 = vector.load %arg4[%c0_5, %c0_6] : memref<64x128xbf16, #tpu.memory_space<vmem>>, vector<64x128xbf16>
    %cst_7 = arith.constant dense<0.000000e+00> : vector<16x128xf32>
    %5 = tpu.matmul %1, %4, %cst_7 {dimension_numbers = #tpu.dot_dimension_numbers<[1], [0], [0], [1], [0, 0, 1, 1], [], []>} : vector<16x64xbf16>, vector<64x128xbf16>, vector<16x128xf32> -> vector<16x128xf32>
    %6 = arith.addf %3, %5 : vector<16x128xf32>
    %c0_8 = arith.constant 0 : index
    %c0_9 = arith.constant 0 : index
    %7 = vector.load %arg5[%c0_8, %c0_9] : memref<1x128xf32, #tpu.memory_space<vmem>>, vector<1x128xf32>
    %8 = vector.broadcast %7 : vector<1x128xf32> to vector<16x128xf32>
    %9 = arith.addf %6, %8 : vector<16x128xf32>
    %cst_10 = arith.constant 0.000000e+00 : f32
    %10 = vector.broadcast %cst_10 : f32 to vector<16x128xf32>
    %11 = arith.cmpf ogt, %9, %10 : vector<16x128xf32>
    %cst_11 = arith.constant 2.000000e-01 : f32
    %12 = vector.broadcast %cst_11 : f32 to vector<16x128xf32>
    %13 = arith.mulf %12, %9 : vector<16x128xf32>
    %14 = arith.select %11, %9, %13 : vector<16x128xi1>, vector<16x128xf32>
    %15 = arith.truncf %14 : vector<16x128xf32> to vector<16x128xbf16>
    %c0_12 = arith.constant 0 : index
    %c0_13 = arith.constant 0 : index
    %16 = vector.load %arg6[%c0_12, %c0_13] : memref<128x128xbf16, #tpu.memory_space<vmem>>, vector<128x128xbf16>
    %cst_14 = arith.constant dense<0.000000e+00> : vector<16x128xf32>
    %17 = tpu.matmul %15, %16, %cst_14 {dimension_numbers = #tpu.dot_dimension_numbers<[1], [0], [0], [1], [0, 0, 1, 1], [], []>} : vector<16x128xbf16>, vector<128x128xbf16>, vector<16x128xf32> -> vector<16x128xf32>
    %c0_15 = arith.constant 0 : index
    %c0_16 = arith.constant 0 : index
    %18 = vector.load %arg7[%c0_15, %c0_16] : memref<1x128xf32, #tpu.memory_space<vmem>>, vector<1x128xf32>
    %19 = vector.broadcast %18 : vector<1x128xf32> to vector<16x128xf32>
    %20 = arith.addf %17, %19 : vector<16x128xf32>
    %cst_17 = arith.constant 0.000000e+00 : f32
    %21 = vector.broadcast %cst_17 : f32 to vector<16x128xf32>
    %22 = arith.cmpf ogt, %20, %21 : vector<16x128xf32>
    %cst_18 = arith.constant 2.000000e-01 : f32
    %23 = vector.broadcast %cst_18 : f32 to vector<16x128xf32>
    %24 = arith.mulf %23, %20 : vector<16x128xf32>
    %25 = arith.select %22, %20, %24 : vector<16x128xi1>, vector<16x128xf32>
    %26 = arith.truncf %25 : vector<16x128xf32> to vector<16x128xbf16>
    %c0_19 = arith.constant 0 : index
    %c0_20 = arith.constant 0 : index
    %27 = vector.load %arg8[%c0_19, %c0_20] : memref<128x128xbf16, #tpu.memory_space<vmem>>, vector<128x128xbf16>
    %cst_21 = arith.constant dense<0.000000e+00> : vector<16x128xf32>
    %28 = tpu.matmul %26, %27, %cst_21 {dimension_numbers = #tpu.dot_dimension_numbers<[1], [0], [0], [1], [0, 0, 1, 1], [], []>} : vector<16x128xbf16>, vector<128x128xbf16>, vector<16x128xf32> -> vector<16x128xf32>
    %c0_22 = arith.constant 0 : index
    %c0_23 = arith.constant 0 : index
    %29 = vector.load %arg9[%c0_22, %c0_23] : memref<1x128xf32, #tpu.memory_space<vmem>>, vector<1x128xf32>
    %30 = vector.broadcast %29 : vector<1x128xf32> to vector<16x128xf32>
    %31 = arith.addf %28, %30 : vector<16x128xf32>
    %cst_24 = arith.constant 0.000000e+00 : f32
    %32 = vector.broadcast %cst_24 : f32 to vector<16x128xf32>
    %33 = arith.cmpf ogt, %31, %32 : vector<16x128xf32>
    %cst_25 = arith.constant 2.000000e-01 : f32
    %34 = vector.broadcast %cst_25 : f32 to vector<16x128xf32>
    %35 = arith.mulf %34, %31 : vector<16x128xf32>
    %36 = arith.select %33, %31, %35 : vector<16x128xi1>, vector<16x128xf32>
    %c0_26 = arith.constant 0 : index
    %c0_27 = arith.constant 0 : index
    %37 = vector.load %arg10[%c0_26, %c0_27] : memref<1x128xf32, #tpu.memory_space<vmem>>, vector<1x128xf32>
    %38 = tpu.transpose %36, [1, 0] : vector<16x128xf32> -> vector<128x16xf32>
    %cst_28 = arith.constant dense<0.000000e+00> : vector<1x16xf32>
    %39 = tpu.matmul %37, %38, %cst_28 {dimension_numbers = #tpu.dot_dimension_numbers<[1], [0], [0], [1], [0, 0, 1, 1], [], []>} : vector<1x128xf32>, vector<128x16xf32>, vector<1x16xf32> -> vector<1x16xf32>
    %c0_29 = arith.constant 0 : index
    %c0_30 = arith.constant 0 : index
    %40 = vector.load %arg11[%c0_29, %c0_30] : memref<1x1xf32, #tpu.memory_space<vmem>>, vector<1x1xf32>
    %41 = vector.broadcast %40 : vector<1x1xf32> to vector<1x16xf32>
    %42 = arith.addf %39, %41 : vector<1x16xf32>
    %c0_31 = arith.constant 0 : index
    %c0_32 = arith.constant 0 : index
    %43 = vector.load %arg12[%c0_31, %c0_32] : memref<1x16xf32, #tpu.memory_space<vmem>>, vector<1x16xf32>
    tpu.vector_store %arg12[%c0_31, %c0_32], %42 {strides = array<i32>} : memref<1x16xf32, #tpu.memory_space<vmem>>, vector<1x16xf32>,
    return
  }
  func.func @transform_0(%arg0: i32) -> (i32, i32) {
    %c0_i32 = arith.constant 0 : i32
    %c0_i32_0 = arith.constant 0 : i32
    return %arg0, %c0_i32 : i32, i32
  }
  func.func @transform_1(%arg0: i32) -> (i32, i32) {
    %c0_i32 = arith.constant 0 : i32
    %c0_i32_0 = arith.constant 0 : i32
    return %arg0, %c0_i32 : i32, i32
  }
  func.func @transform_2(%arg0: i32) -> (i32, i32) {
    %c0_i32 = arith.constant 0 : i32
    %c0_i32_0 = arith.constant 0 : i32
    %c0_i32_1 = arith.constant 0 : i32
    return %c0_i32, %c0_i32_0 : i32, i32
  }
  func.func @transform_3(%arg0: i32) -> (i32, i32) {
    %c0_i32 = arith.constant 0 : i32
    %c0_i32_0 = arith.constant 0 : i32
    %c0_i32_1 = arith.constant 0 : i32
    return %c0_i32, %c0_i32_0 : i32, i32
  }
  func.func @transform_4(%arg0: i32) -> (i32, i32) {
    %c0_i32 = arith.constant 0 : i32
    %c0_i32_0 = arith.constant 0 : i32
    %c0_i32_1 = arith.constant 0 : i32
    return %c0_i32, %c0_i32_0 : i32, i32
  }
  func.func @transform_5(%arg0: i32) -> (i32, i32) {
    %c0_i32 = arith.constant 0 : i32
    %c0_i32_0 = arith.constant 0 : i32
    %c0_i32_1 = arith.constant 0 : i32
    return %c0_i32, %c0_i32_0 : i32, i32
  }
  func.func @transform_6(%arg0: i32) -> (i32, i32) {
    %c0_i32 = arith.constant 0 : i32
    %c0_i32_0 = arith.constant 0 : i32
    %c0_i32_1 = arith.constant 0 : i32
    return %c0_i32, %c0_i32_0 : i32, i32
  }
  func.func @transform_7(%arg0: i32) -> (i32, i32) {
    %c0_i32 = arith.constant 0 : i32
    %c0_i32_0 = arith.constant 0 : i32
    %c0_i32_1 = arith.constant 0 : i32
    return %c0_i32, %c0_i32_0 : i32, i32
  }
  func.func @transform_8(%arg0: i32) -> (i32, i32) {
    %c0_i32 = arith.constant 0 : i32
    %c0_i32_0 = arith.constant 0 : i32
    %c0_i32_1 = arith.constant 0 : i32
    return %c0_i32, %c0_i32_0 : i32, i32
  }
  func.func @transform_9(%arg0: i32) -> (i32, i32) {
    %c0_i32 = arith.constant 0 : i32
    %c0_i32_0 = arith.constant 0 : i32
    %c0_i32_1 = arith.constant 0 : i32
    return %c0_i32, %c0_i32_0 : i32, i32
  }
  func.func @transform_10(%arg0: i32) -> (i32, i32) {
    %c0_i32 = arith.constant 0 : i32
    %c0_i32_0 = arith.constant 0 : i32
    %c0_i32_1 = arith.constant 0 : i32
    return %c0_i32, %c0_i32_0 : i32, i32
  }
  func.func @transform_11(%arg0: i32) -> (i32, i32) {
    %c0_i32 = arith.constant 0 : i32
    %c0_i32_0 = arith.constant 0 : i32
    return %c0_i32, %arg0 : i32, i32
  }
}

</mosaic_0001>

<llo_original>
// kernel: tpu_custom_call.1
$region0: #{tpu_custom_call.1}
  #allocation0 [shape = 'u32[]', space=smem, size = 0x4, offset = 0x4, fixed_abs, tag = 'smem constant byte address 0x4 - core index']
  #allocation1 [shape = 'u32[144,128]{1,0:T(1,128)}', space=vmem, size = 0x12000, scoped, tag = 'internal scratch']
  #allocation2 [shape = 'f32[1,1]{1,0:T(1,128)S(1)}', space=vmem, size = 0x200, scoped, tag = 'scoped memory for tpu_custom_call.1']
  %s0 = inlined_call_operand.hbm [shape: bf16[16,128], index: 0, kind: input, shape index: {}]
  %s1 = inlined_call_operand.hbm [shape: bf16[16,64], index: 1, kind: input, shape index: {}]
  %s2 = inlined_call_operand.hbm [shape: bf16[128,128], index: 2, kind: input, shape index: {}]
  %s3 = inlined_call_operand.hbm [shape: bf16[64,128], index: 3, kind: input, shape index: {}]
  %s4 = inlined_call_operand.vmem [shape: f32[1,128], index: 4, kind: input, shape index: {}]
  %s5 = inlined_call_operand.hbm [shape: bf16[128,128], index: 5, kind: input, shape index: {}]
  %s6 = inlined_call_operand.vmem [shape: f32[1,128], index: 6, kind: input, shape index: {}]
  %s7 = inlined_call_operand.hbm [shape: bf16[128,128], index: 7, kind: input, shape index: {}]
  %s8 = inlined_call_operand.vmem [shape: f32[1,128], index: 8, kind: input, shape index: {}]
  %s9 = inlined_call_operand.vmem [shape: f32[1,128], index: 9, kind: input, shape index: {}]
  %s10 = inlined_call_operand.<no memory space> [shape: f32[1,1], index: 10, kind: input, shape index: {}]
  %s11 = inlined_call_operand.hbm [shape: f32[1,16], index: 11, kind: output, shape index: {}]
  %s12 = sld [smem:[#allocation0]]
  $region78: #{tpu_custom_call.1} parent=0
    _
  %s14 = ssub.s32 1, %s12
  %s15 = scalar_select 0, %s14, %s12
  %v16 = vstv %s10
  %17 = vst [vmem:[#allocation2] sm:$0x1] %v16
  $region1: #{tpu_custom_call.1} parent=0
    #allocation3 [shape = 'u8[4096]{0}', space=vmem, size = 0x1000, scoped, tag = 'input window, operand 0, single buffered']
    #allocation4 [shape = 's32[1]{0}', space=sflag, size = 0x4, scoped, tag = 'scoped memory for tpu_custom_call.1']
    #allocation5 [shape = 's32[1]{0}', space=sflag, size = 0x4, scoped, tag = 'scoped memory for tpu_custom_call.1']
    #allocation6 [shape = 'u8[4096]{0}', space=vmem, size = 0x1000, scoped, tag = 'input window, operand 1, single buffered']
    #allocation7 [shape = 's32[1]{0}', space=sflag, size = 0x4, scoped, tag = 'scoped memory for tpu_custom_call.1']
    #allocation8 [shape = 'u8[32768]{0}', space=vmem, size = 0x8000, scoped, tag = 'input window, operand 2, single buffered']
    #allocation9 [shape = 'u8[16384]{0}', space=vmem, size = 0x4000, scoped, tag = 'input window, operand 3, single buffered']
    #allocation10 [shape = 's32[1]{0}', space=sflag, size = 0x4, scoped, tag = 'scoped memory for tpu_custom_call.1']
    #allocation11 [shape = 'u8[32768]{0}', space=vmem, size = 0x8000, scoped, tag = 'input window, operand 5, single buffered']
    #allocation12 [shape = 'u8[32768]{0}', space=vmem, size = 0x8000, scoped, tag = 'input window, operand 7, single buffered']
    #allocation13 [shape = 's32[1]{0}', space=sflag, size = 0x4, scoped, tag = 'scoped memory for tpu_custom_call.1']
    #allocation14 [shape = 'u8[512]{0}', space=vmem, size = 0x400, scoped, tag = 'output window, operand 0, single buffered']
    %18 = vsyncpa [#allocation4], 0
    %19 = vsyncpa [#allocation7], 0
    %20 = vsyncpa [#allocation10], 0
    %21 = vsyncpa [#allocation13], 0
    %22 = vsyncpa [#allocation5], 0
    // Predicated region
    $region2: #{tpu_custom_call.1} parent=1 // pred_check
      _
    $region3: #{tpu_custom_call.1} parent=1 // pred_check_branch
      %24 = sbr.rel (0) target = $region5
    $region4: #{tpu_custom_call.1} parent=1 // pred_region
      %s26 = ssub.s32 128, 128
      %27 = vsyncadd [#allocation4], %s26
      %s28 = sshll.u32 [#allocation3], 4
      %s29 = int_to_ptr.vmem [resolvable:$true] %s28
      %34 = dma.hbm_to_vmem [thread:$0]  %s0, 128, %s29, [#allocation4], 64, 64, 4
    $region5: #{tpu_custom_call.1} parent=1 // pred_fallthru
      _
    // Predicated region
    $region6: #{tpu_custom_call.1} parent=1 // pred_check
      _
    $region7: #{tpu_custom_call.1} parent=1 // pred_check_branch
      %36 = sbr.rel (0) target = $region9
    $region8: #{tpu_custom_call.1} parent=1 // pred_region
      %s38 = ssub.s32 128, 128
      %39 = vsyncadd [#allocation7], %s38
      %s40 = sshll.u32 [#allocation6], 4
      %s41 = int_to_ptr.vmem [resolvable:$true] %s40
      %46 = dma.hbm_to_vmem [thread:$0]  %s1, 128, %s41, [#allocation7], 64, 64, 4
    $region9: #{tpu_custom_call.1} parent=1 // pred_fallthru
      _
    // Predicated region
    $region10: #{tpu_custom_call.1} parent=1 // pred_check
      _
    $region11: #{tpu_custom_call.1} parent=1 // pred_check_branch
      %48 = sbr.rel (0) target = $region13
    $region12: #{tpu_custom_call.1} parent=1 // pred_region
      %s50 = ssub.s32 1024, 1024
      %51 = vsyncadd [#allocation7], %s50
      %s52 = sshll.u32 [#allocation8], 4
      %s53 = int_to_ptr.vmem [resolvable:$true] %s52
      %58 = dma.hbm_to_vmem [thread:$0]  %s2, 1024, %s53, [#allocation7], 64, 64, 4
    $region13: #{tpu_custom_call.1} parent=1 // pred_fallthru
      _
    // Predicated region
    $region14: #{tpu_custom_call.1} parent=1 // pred_check
      _
    $region15: #{tpu_custom_call.1} parent=1 // pred_check_branch
      %60 = sbr.rel (0) target = $region17
    $region16: #{tpu_custom_call.1} parent=1 // pred_region
      %s62 = ssub.s32 512, 512
      %63 = vsyncadd [#allocation10], %s62
      %s64 = sshll.u32 [#allocation9], 4
      %s65 = int_to_ptr.vmem [resolvable:$true] %s64
      %70 = dma.hbm_to_vmem [thread:$0]  %s3, 512, %s65, [#allocation10], 64, 64, 4
    $region17: #{tpu_custom_call.1} parent=1 // pred_fallthru
      _
    // Predicated region
    $region18: #{tpu_custom_call.1} parent=1 // pred_check
      _
    $region19: #{tpu_custom_call.1} parent=1 // pred_check_branch
      %72 = sbr.rel (0) target = $region21
    $region20: #{tpu_custom_call.1} parent=1 // pred_region
      _
    $region21: #{tpu_custom_call.1} parent=1 // pred_fallthru
      _
    // Predicated region
    $region22: #{tpu_custom_call.1} parent=1 // pred_check
      _
    $region23: #{tpu_custom_call.1} parent=1 // pred_check_branch
      %74 = sbr.rel (0) target = $region25
    $region24: #{tpu_custom_call.1} parent=1 // pred_region
      %s76 = ssub.s32 1024, 1024
      %77 = vsyncadd [#allocation10], %s76
      %s78 = sshll.u32 [#allocation11], 4
      %s79 = int_to_ptr.vmem [resolvable:$true] %s78
      %84 = dma.hbm_to_vmem [thread:$0]  %s5, 1024, %s79, [#allocation10], 64, 64, 4
    $region25: #{tpu_custom_call.1} parent=1 // pred_fallthru
      _
    // Predicated region
    $region26: #{tpu_custom_call.1} parent=1 // pred_check
      _
    $region27: #{tpu_custom_call.1} parent=1 // pred_check_branch
      %86 = sbr.rel (0) target = $region29
    $region28: #{tpu_custom_call.1} parent=1 // pred_region
      _
    $region29: #{tpu_custom_call.1} parent=1 // pred_fallthru
      _
    // Predicated region
    $region30: #{tpu_custom_call.1} parent=1 // pred_check
      _
    $region31: #{tpu_custom_call.1} parent=1 // pred_check_branch
      %88 = sbr.rel (0) target = $region33
    $region32: #{tpu_custom_call.1} parent=1 // pred_region
      %s90 = ssub.s32 1024, 1024
      %91 = vsyncadd [#allocation13], %s90
      %s92 = sshll.u32 [#allocation12], 4
      %s93 = int_to_ptr.vmem [resolvable:$true] %s92
      %98 = dma.hbm_to_vmem [thread:$0]  %s7, 1024, %s93, [#allocation13], 64, 64, 4
    $region33: #{tpu_custom_call.1} parent=1 // pred_fallthru
      _
    // Predicated region
    $region34: #{tpu_custom_call.1} parent=1 // pred_check
      _
    $region35: #{tpu_custom_call.1} parent=1 // pred_check_branch
      %100 = sbr.rel (0) target = $region37
    $region36: #{tpu_custom_call.1} parent=1 // pred_region
      _
    $region37: #{tpu_custom_call.1} parent=1 // pred_fallthru
      _
    // Predicated region
    $region38: #{tpu_custom_call.1} parent=1 // pred_check
      _
    $region39: #{tpu_custom_call.1} parent=1 // pred_check_branch
      %102 = sbr.rel (0) target = $region41
    $region40: #{tpu_custom_call.1} parent=1 // pred_region
      _
    $region41: #{tpu_custom_call.1} parent=1 // pred_fallthru
      _
    // Predicated region
    $region42: #{tpu_custom_call.1} parent=1 // pred_check
      _
    $region43: #{tpu_custom_call.1} parent=1 // pred_check_branch
      %104 = sbr.rel (0) target = $region45
    $region44: #{tpu_custom_call.1} parent=1 // pred_region
      _
    $region45: #{tpu_custom_call.1} parent=1 // pred_fallthru
      _
    // Predicated region
    $region46: #{tpu_custom_call.1} parent=1 // pred_check
      _
    $region47: #{tpu_custom_call.1} parent=1 // pred_check_branch
      %106 = sbr.rel (0) target = $region49
    $region48: #{tpu_custom_call.1} parent=1 // pred_region
      %107 = dma.done [#allocation4], 128
    $region49: #{tpu_custom_call.1} parent=1 // pred_fallthru
      _
    // Predicated region
    $region50: #{tpu_custom_call.1} parent=1 // pred_check
      _
    $region51: #{tpu_custom_call.1} parent=1 // pred_check_branch
      %109 = sbr.rel (0) target = $region53
    $region52: #{tpu_custom_call.1} parent=1 // pred_region
      %110 = dma.done [#allocation7], 128
    $region53: #{tpu_custom_call.1} parent=1 // pred_fallthru
      _
    // Predicated region
    $region54: #{tpu_custom_call.1} parent=1 // pred_check
      _
    $region55: #{tpu_custom_call.1} parent=1 // pred_check_branch
      %112 = sbr.rel (0) target = $region57
    $region56: #{tpu_custom_call.1} parent=1 // pred_region
      %113 = dma.done [#allocation7], 1024
    $region57: #{tpu_custom_call.1} parent=1 // pred_fallthru
      _
    // Predicated region
    $region58: #{tpu_custom_call.1} parent=1 // pred_check
      _
    $region59: #{tpu_custom_call.1} parent=1 // pred_check_branch
      %115 = sbr.rel (0) target = $region61
    $region60: #{tpu_custom_call.1} parent=1 // pred_region
      %116 = dma.done [#allocation10], 512
    $region61: #{tpu_custom_call.1} parent=1 // pred_fallthru
      _
    // Predicated region
    $region62: #{tpu_custom_call.1} parent=1 // pred_check
      _
    $region63: #{tpu_custom_call.1} parent=1 // pred_check_branch
      %118 = sbr.rel (0) target = $region65
    $region64: #{tpu_custom_call.1} parent=1 // pred_region
      %119 = dma.done [#allocation10], 1024
    $region65: #{tpu_custom_call.1} parent=1 // pred_fallthru
      _
    // Predicated region
    $region66: #{tpu_custom_call.1} parent=1 // pred_check
      _
    $region67: #{tpu_custom_call.1} parent=1 // pred_check_branch
      %121 = sbr.rel (0) target = $region69
    $region68: #{tpu_custom_call.1} parent=1 // pred_region
      %122 = dma.done [#allocation13], 1024
    $region69: #{tpu_custom_call.1} parent=1 // pred_fallthru
      _
    %v124 = vld [vmem:[#allocation3] sm:$0xf]
    %v125 = vld [vmem:[#allocation3 + $0x4] sm:$0xf]
    %v126 = vld [vmem:[#allocation6] sm:$0xf]
    %v127 = vld [vmem:[#allocation6 + $0x4] sm:$0xf]
    %v128 = vld [vmem:[#allocation8] sm:$0xf]
    %v129 = vld [vmem:[#allocation8 + $0x4] sm:$0xf]
    %v130 = vld [vmem:[#allocation8 + $0x8] sm:$0xf]
    %v131 = vld [vmem:[#allocation8 + $0xc] sm:$0xf]
    %v132 = vld [vmem:[#allocation8 + $0x10] sm:$0xf]
    %v133 = vld [vmem:[#allocation8 + $0x14] sm:$0xf]
    %v134 = vld [vmem:[#allocation8 + $0x18] sm:$0xf]
    %v135 = vld [vmem:[#allocation8 + $0x1c] sm:$0xf]
    %v136 = vld [vmem:[#allocation8 + $0x20] sm:$0xf]
    %v137 = vld [vmem:[#allocation8 + $0x24] sm:$0xf]
    %v138 = vld [vmem:[#allocation8 + $0x28] sm:$0xf]
    %v139 = vld [vmem:[#allocation8 + $0x2c] sm:$0xf]
    %v140 = vld [vmem:[#allocation8 + $0x30] sm:$0xf]
    %v141 = vld [vmem:[#allocation8 + $0x34] sm:$0xf]
    %v142 = vld [vmem:[#allocation8 + $0x38] sm:$0xf]
    %v143 = vld [vmem:[#allocation8 + $0x3c] sm:$0xf]
    %v144 = vld [vmem:[#allocation9] sm:$0xf]
    %v145 = vld [vmem:[#allocation9 + $0x4] sm:$0xf]
    %v146 = vld [vmem:[#allocation9 + $0x8] sm:$0xf]
    %v147 = vld [vmem:[#allocation9 + $0xc] sm:$0xf]
    %v148 = vld [vmem:[#allocation9 + $0x10] sm:$0xf]
    %v149 = vld [vmem:[#allocation9 + $0x14] sm:$0xf]
    %v150 = vld [vmem:[#allocation9 + $0x18] sm:$0xf]
    %v151 = vld [vmem:[#allocation9 + $0x1c] sm:$0xf]
    %v154 = vunpack.c.l.b16 %v126
    %v155 = vunpack.c.l.b16 %v127
    %v156 = vpack.c.b16 %v155, %v154
    %v165 = vunpack.c.l.b16 %v144
    %v166 = vunpack.c.l.b16 %v145
    %v167 = vunpack.c.l.b16 %v146
    %v168 = vunpack.c.l.b16 %v147
    %v169 = vunpack.c.l.b16 %v148
    %v170 = vunpack.c.l.b16 %v149
    %v171 = vunpack.c.l.b16 %v150
    %v172 = vunpack.c.l.b16 %v151
    %v173 = vpack.c.b16 %v166, %v165
    %v174 = vpack.c.b16 %v168, %v167
    %v175 = vpack.c.b16 %v170, %v169
    %v176 = vpack.c.b16 %v172, %v171
    %vm181 = vcmask 523264
    %v183 = vsel %vm181, %v156, 0
    %185 = vmatprep.subr.bf16.mxu0 0
    %186 = vmatpush1.bf16.msra.mxu0 0
    %187 = vmatprep.subr.bf16.mxu0 0
    %188 = vmatpush1.bf16.msra.mxu0 0
    %189 = vmatprep.subr.bf16.mxu0 0
    %190 = vmatpush1.bf16.msra.mxu0 0
    %191 = vmatprep.subr.bf16.mxu0 0
    %192 = vmatpush1.bf16.msra.mxu0 0
    %193 = vmatprep.subr.bf16.mxu0 0
    %194 = vmatpush1.bf16.msra.mxu0 %v176
    %195 = vmatprep.subr.bf16.mxu0 0
    %196 = vmatpush1.bf16.msra.mxu0 %v175
    %197 = vmatprep.subr.bf16.mxu0 0
    %198 = vmatpush1.bf16.msra.mxu0 %v174
    %199 = vmatprep.subr.bf16.mxu0 0
    %200 = vmatpush1.bf16.msra.mxu0 %v173
    %201 = vmatprep.subr.bf16.mxu0 0
    %202 = vmatpush2.bf16.msra.mxu0 0
    %203 = vmatprep.subr.bf16.mxu0 0
    %204 = vmatpush2.bf16.msra.mxu0 0
    %205 = vmatprep.subr.bf16.mxu0 0
    %206 = vmatpush2.bf16.msra.mxu0 0
    %207 = vmatprep.subr.bf16.mxu0 0
    %208 = vmatpush2.bf16.msra.mxu0 0
    %209 = vmatprep.subr.bf16.mxu0 0
    %210 = vmatpush2.bf16.msra.mxu0 0
    %211 = vmatprep.subr.bf16.mxu0 0
    %212 = vmatpush2.bf16.msra.mxu0 0
    %213 = vmatprep.subr.bf16.mxu0 0
    %214 = vmatpush2.bf16.msra.mxu0 0
    %215 = vmatprep.subr.bf16.mxu0 0
    %216 = vmatpush2.bf16.msra.mxu0 0
    %217 = vmatprep.mubr.bf16.mxu0 0
    %218 = vmatmul.mubr.bf16.gmra.mxu0 %v183
    %v219 = vpop.f32.mrf.mxu0
    %v220 = vadd.f32 0.0, %v219
    %v221 = vpop.f32.mrf.mxu0
    %v222 = vpop.f32.mrf.mxu0
    %v223 = vadd.f32 0.0, %v222
    %v224 = vpop.f32.mrf.mxu0
    %225 = vdwg.mxu0
    %v228 = vunpack.c.l.b16 %v124
    %v229 = vunpack.c.l.b16 %v125
    %v230 = vpack.c.b16 %v229, %v228
    %v248 = vunpack.c.l.b16 %v128
    %v249 = vunpack.c.l.b16 %v129
    %v250 = vunpack.c.l.b16 %v130
    %v251 = vunpack.c.l.b16 %v131
    %v252 = vunpack.c.l.b16 %v132
    %v253 = vunpack.c.l.b16 %v133
    %v254 = vunpack.c.l.b16 %v134
    %v255 = vunpack.c.l.b16 %v135
    %v256 = vunpack.c.l.b16 %v136
    %v257 = vunpack.c.l.b16 %v137
    %v258 = vunpack.c.l.b16 %v138
    %v259 = vunpack.c.l.b16 %v139
    %v260 = vunpack.c.l.b16 %v140
    %v261 = vunpack.c.l.b16 %v141
    %v262 = vunpack.c.l.b16 %v142
    %v263 = vunpack.c.l.b16 %v143
    %v264 = vpack.c.b16 %v249, %v248
    %v265 = vpack.c.b16 %v251, %v250
    %v266 = vpack.c.b16 %v253, %v252
    %v267 = vpack.c.b16 %v255, %v254
    %v268 = vpack.c.b16 %v257, %v256
    %v269 = vpack.c.b16 %v259, %v258
    %v270 = vpack.c.b16 %v261, %v260
    %v271 = vpack.c.b16 %v263, %v262
    %280 = vmatprep.subr.bf16.mxu0 0
    %281 = vmatpush1.bf16.msra.mxu0 %v271
    %282 = vmatprep.subr.bf16.mxu0 0
    %283 = vmatpush1.bf16.msra.mxu0 %v270
    %284 = vmatprep.subr.bf16.mxu0 0
    %285 = vmatpush1.bf16.msra.mxu0 %v269
    %286 = vmatprep.subr.bf16.mxu0 0
    %287 = vmatpush1.bf16.msra.mxu0 %v268
    %288 = vmatprep.subr.bf16.mxu0 0
    %289 = vmatpush1.bf16.msra.mxu0 %v267
    %290 = vmatprep.subr.bf16.mxu0 0
    %291 = vmatpush1.bf16.msra.mxu0 %v266
    %292 = vmatprep.subr.bf16.mxu0 0
    %293 = vmatpush1.bf16.msra.mxu0 %v265
    %294 = vmatprep.subr.bf16.mxu0 0
    %295 = vmatpush1.bf16.msra.mxu0 %v264
    %296 = vmatprep.subr.bf16.mxu0 0
    %297 = vmatpush2.bf16.msra.mxu0 0
    %298 = vmatprep.subr.bf16.mxu0 0
    %299 = vmatpush2.bf16.msra.mxu0 0
    %300 = vmatprep.subr.bf16.mxu0 0
    %301 = vmatpush2.bf16.msra.mxu0 0
    %302 = vmatprep.subr.bf16.mxu0 0
    %303 = vmatpush2.bf16.msra.mxu0 0
    %304 = vmatprep.subr.bf16.mxu0 0
    %305 = vmatpush2.bf16.msra.mxu0 0
    %306 = vmatprep.subr.bf16.mxu0 0
    %307 = vmatpush2.bf16.msra.mxu0 0
    %308 = vmatprep.subr.bf16.mxu0 0
    %309 = vmatpush2.bf16.msra.mxu0 0
    %310 = vmatprep.subr.bf16.mxu0 0
    %311 = vmatpush2.bf16.msra.mxu0 0
    %312 = vmatprep.mubr.bf16.mxu0 0
    %313 = vmatmul.mubr.bf16.gmra.mxu0 %v230
    %v314 = vpop.f32.mrf.mxu0
    %v315 = vadd.f32 %v220, %v314
    %v316 = vpop.f32.mrf.mxu0
    %v317 = vpop.f32.mrf.mxu0
    %v318 = vadd.f32 %v223, %v317
    %v319 = vpop.f32.mrf.mxu0
    %320 = vdwg.mxu0
    %v321 = vld [vmem:[%s4] sm:$0x1]
    %v323 = vlaneseq
    %v324 = vshrl.u32 %v323, 7
    %v325 = vsub.s32 0, %v324
    %v326 = vrot.slane %v321, %v325
    %v328 = vadd.f32 %v315, %v326
    %v329 = vadd.f32 %v318, %v326
    %vm330 = vcmp.gt.f32.partialorder %v328, 0.0
    %vm331 = vcmp.gt.f32.partialorder %v329, 0.0
    %v332 = vmul.f32 %v328, 0.2
    %v333 = vmul.f32 %v329, 0.2
    %v334 = vsel %vm330, %v328, %v332
    %v335 = vsel %vm331, %v329, %v333
    %v336 = vpack.c.bf16 %v335, %v334
    %v337 = vld [vmem:[#allocation11] sm:$0xf]
    %v338 = vld [vmem:[#allocation11 + $0x4] sm:$0xf]
    %v339 = vld [vmem:[#allocation11 + $0x8] sm:$0xf]
    %v340 = vld [vmem:[#allocation11 + $0xc] sm:$0xf]
    %v341 = vld [vmem:[#allocation11 + $0x10] sm:$0xf]
    %v342 = vld [vmem:[#allocation11 + $0x14] sm:$0xf]
    %v343 = vld [vmem:[#allocation11 + $0x18] sm:$0xf]
    %v344 = vld [vmem:[#allocation11 + $0x1c] sm:$0xf]
    %v345 = vld [vmem:[#allocation11 + $0x20] sm:$0xf]
    %v346 = vld [vmem:[#allocation11 + $0x24] sm:$0xf]
    %v347 = vld [vmem:[#allocation11 + $0x28] sm:$0xf]
    %v348 = vld [vmem:[#allocation11 + $0x2c] sm:$0xf]
    %v349 = vld [vmem:[#allocation11 + $0x30] sm:$0xf]
    %v350 = vld [vmem:[#allocation11 + $0x34] sm:$0xf]
    %v351 = vld [vmem:[#allocation11 + $0x38] sm:$0xf]
    %v352 = vld [vmem:[#allocation11 + $0x3c] sm:$0xf]
    %v353 = vld [vmem:[%s6] sm:$0x1]
    %v355 = vlaneseq
    %v356 = vshrl.u32 %v355, 7
    %v357 = vsub.s32 0, %v356
    %v358 = vrot.slane %v353, %v357
    %v376 = vunpack.c.l.b16 %v337
    %v377 = vunpack.c.l.b16 %v338
    %v378 = vunpack.c.l.b16 %v339
    %v379 = vunpack.c.l.b16 %v340
    %v380 = vunpack.c.l.b16 %v341
    %v381 = vunpack.c.l.b16 %v342
    %v382 = vunpack.c.l.b16 %v343
    %v383 = vunpack.c.l.b16 %v344
    %v384 = vunpack.c.l.b16 %v345
    %v385 = vunpack.c.l.b16 %v346
    %v386 = vunpack.c.l.b16 %v347
    %v387 = vunpack.c.l.b16 %v348
    %v388 = vunpack.c.l.b16 %v349
    %v389 = vunpack.c.l.b16 %v350
    %v390 = vunpack.c.l.b16 %v351
    %v391 = vunpack.c.l.b16 %v352
    %v392 = vpack.c.b16 %v377, %v376
    %v393 = vpack.c.b16 %v379, %v378
    %v394 = vpack.c.b16 %v381, %v380
    %v395 = vpack.c.b16 %v383, %v382
    %v396 = vpack.c.b16 %v385, %v384
    %v397 = vpack.c.b16 %v387, %v386
    %v398 = vpack.c.b16 %v389, %v388
    %v399 = vpack.c.b16 %v391, %v390
    %408 = vmatprep.subr.bf16.mxu0 0
    %409 = vmatpush1.bf16.msra.mxu0 %v399
    %410 = vmatprep.subr.bf16.mxu0 0
    %411 = vmatpush1.bf16.msra.mxu0 %v398
    %412 = vmatprep.subr.bf16.mxu0 0
    %413 = vmatpush1.bf16.msra.mxu0 %v397
    %414 = vmatprep.subr.bf16.mxu0 0
    %415 = vmatpush1.bf16.msra.mxu0 %v396
    %416 = vmatprep.subr.bf16.mxu0 0
    %417 = vmatpush1.bf16.msra.mxu0 %v395
    %418 = vmatprep.subr.bf16.mxu0 0
    %419 = vmatpush1.bf16.msra.mxu0 %v394
    %420 = vmatprep.subr.bf16.mxu0 0
    %421 = vmatpush1.bf16.msra.mxu0 %v393
    %422 = vmatprep.subr.bf16.mxu0 0
    %423 = vmatpush1.bf16.msra.mxu0 %v392
    %424 = vmatprep.subr.bf16.mxu0 0
    %425 = vmatpush2.bf16.msra.mxu0 0
    %426 = vmatprep.subr.bf16.mxu0 0
    %427 = vmatpush2.bf16.msra.mxu0 0
    %428 = vmatprep.subr.bf16.mxu0 0
    %429 = vmatpush2.bf16.msra.mxu0 0
    %430 = vmatprep.subr.bf16.mxu0 0
    %431 = vmatpush2.bf16.msra.mxu0 0
    %432 = vmatprep.subr.bf16.mxu0 0
    %433 = vmatpush2.bf16.msra.mxu0 0
    %434 = vmatprep.subr.bf16.mxu0 0
    %435 = vmatpush2.bf16.msra.mxu0 0
    %436 = vmatprep.subr.bf16.mxu0 0
    %437 = vmatpush2.bf16.msra.mxu0 0
    %438 = vmatprep.subr.bf16.mxu0 0
    %439 = vmatpush2.bf16.msra.mxu0 0
    %440 = vmatprep.mubr.bf16.mxu0 0
    %441 = vmatmul.mubr.bf16.gmra.mxu0 %v336
    %v442 = vpop.f32.mrf.mxu0
    %v443 = vadd.f32 %v358, %v442
    %v444 = vpop.f32.mrf.mxu0
    %v445 = vpop.f32.mrf.mxu0
    %v446 = vadd.f32 %v358, %v445
    %v447 = vpop.f32.mrf.mxu0
    %448 = vdwg.mxu0
    %vm449 = vcmp.gt.f32.partialorder %v443, 0.0
    %vm450 = vcmp.gt.f32.partialorder %v446, 0.0
    %v451 = vmul.f32 %v443, 0.2
    %v452 = vmul.f32 %v446, 0.2
    %v453 = vsel %vm449, %v443, %v451
    %v454 = vsel %vm450, %v446, %v452
    %v455 = vpack.c.bf16 %v454, %v453
    %v456 = vld [vmem:[#allocation12] sm:$0xf]
    %v457 = vld [vmem:[#allocation12 + $0x4] sm:$0xf]
    %v458 = vld [vmem:[#allocation12 + $0x8] sm:$0xf]
    %v459 = vld [vmem:[#allocation12 + $0xc] sm:$0xf]
    %v460 = vld [vmem:[#allocation12 + $0x10] sm:$0xf]
    %v461 = vld [vmem:[#allocation12 + $0x14] sm:$0xf]
    %v462 = vld [vmem:[#allocation12 + $0x18] sm:$0xf]
    %v463 = vld [vmem:[#allocation12 + $0x1c] sm:$0xf]
    %v464 = vld [vmem:[#allocation12 + $0x20] sm:$0xf]
    %v465 = vld [vmem:[#allocation12 + $0x24] sm:$0xf]
    %v466 = vld [vmem:[#allocation12 + $0x28] sm:$0xf]
    %v467 = vld [vmem:[#allocation12 + $0x2c] sm:$0xf]
    %v468 = vld [vmem:[#allocation12 + $0x30] sm:$0xf]
    %v469 = vld [vmem:[#allocation12 + $0x34] sm:$0xf]
    %v470 = vld [vmem:[#allocation12 + $0x38] sm:$0xf]
    %v471 = vld [vmem:[#allocation12 + $0x3c] sm:$0xf]
    %v472 = vld [vmem:[%s8] sm:$0x1]
    %v474 = vlaneseq
    %v475 = vshrl.u32 %v474, 7
    %v476 = vsub.s32 0, %v475
    %v477 = vrot.slane %v472, %v476
    %v495 = vunpack.c.l.b16 %v456
    %v496 = vunpack.c.l.b16 %v457
    %v497 = vunpack.c.l.b16 %v458
    %v498 = vunpack.c.l.b16 %v459
    %v499 = vunpack.c.l.b16 %v460
    %v500 = vunpack.c.l.b16 %v461
    %v501 = vunpack.c.l.b16 %v462
    %v502 = vunpack.c.l.b16 %v463
    %v503 = vunpack.c.l.b16 %v464
    %v504 = vunpack.c.l.b16 %v465
    %v505 = vunpack.c.l.b16 %v466
    %v506 = vunpack.c.l.b16 %v467
    %v507 = vunpack.c.l.b16 %v468
    %v508 = vunpack.c.l.b16 %v469
    %v509 = vunpack.c.l.b16 %v470
    %v510 = vunpack.c.l.b16 %v471
    %v511 = vpack.c.b16 %v496, %v495
    %v512 = vpack.c.b16 %v498, %v497
    %v513 = vpack.c.b16 %v500, %v499
    %v514 = vpack.c.b16 %v502, %v501
    %v515 = vpack.c.b16 %v504, %v503
    %v516 = vpack.c.b16 %v506, %v505
    %v517 = vpack.c.b16 %v508, %v507
    %v518 = vpack.c.b16 %v510, %v509
    %527 = vmatprep.subr.bf16.mxu0 0
    %528 = vmatpush1.bf16.msra.mxu0 %v518
    %529 = vmatprep.subr.bf16.mxu0 0
    %530 = vmatpush1.bf16.msra.mxu0 %v517
    %531 = vmatprep.subr.bf16.mxu0 0
    %532 = vmatpush1.bf16.msra.mxu0 %v516
    %533 = vmatprep.subr.bf16.mxu0 0
    %534 = vmatpush1.bf16.msra.mxu0 %v515
    %535 = vmatprep.subr.bf16.mxu0 0
    %536 = vmatpush1.bf16.msra.mxu0 %v514
    %537 = vmatprep.subr.bf16.mxu0 0
    %538 = vmatpush1.bf16.msra.mxu0 %v513
    %539 = vmatprep.subr.bf16.mxu0 0
    %540 = vmatpush1.bf16.msra.mxu0 %v512
    %541 = vmatprep.subr.bf16.mxu0 0
    %542 = vmatpush1.bf16.msra.mxu0 %v511
    %543 = vmatprep.subr.bf16.mxu0 0
    %544 = vmatpush2.bf16.msra.mxu0 0
    %545 = vmatprep.subr.bf16.mxu0 0
    %546 = vmatpush2.bf16.msra.mxu0 0
    %547 = vmatprep.subr.bf16.mxu0 0
    %548 = vmatpush2.bf16.msra.mxu0 0
    %549 = vmatprep.subr.bf16.mxu0 0
    %550 = vmatpush2.bf16.msra.mxu0 0
    %551 = vmatprep.subr.bf16.mxu0 0
    %552 = vmatpush2.bf16.msra.mxu0 0
    %553 = vmatprep.subr.bf16.mxu0 0
    %554 = vmatpush2.bf16.msra.mxu0 0
    %555 = vmatprep.subr.bf16.mxu0 0
    %556 = vmatpush2.bf16.msra.mxu0 0
    %557 = vmatprep.subr.bf16.mxu0 0
    %558 = vmatpush2.bf16.msra.mxu0 0
    %559 = vmatprep.mubr.bf16.mxu0 0
    %560 = vmatmul.mubr.bf16.gmra.mxu0 %v455
    %v561 = vpop.f32.mrf.mxu0
    %v562 = vadd.f32 %v477, %v561
    %v563 = vpop.f32.mrf.mxu0
    %v564 = vpop.f32.mrf.mxu0
    %v565 = vadd.f32 %v477, %v564
    %v566 = vpop.f32.mrf.mxu0
    %567 = vdwg.mxu0
    %vm568 = vcmp.gt.f32.partialorder %v562, 0.0
    %vm569 = vcmp.gt.f32.partialorder %v565, 0.0
    %v570 = vmul.f32 %v562, 0.2
    %v571 = vmul.f32 %v565, 0.2
    %v572 = vsel %vm568, %v562, %v570
    %v573 = vsel %vm569, %v565, %v571
    %v574 = vld [vmem:[%s9] sm:$0x1]
    %v575 = vld [vmem:[#allocation2] sm:$0x1]
    %577 = vset.pattern.permute.xlu0 0
    %578 = vperm.xlu0 %577, %v575
    %v579 = vpop.permute.xlu0 %578
    %v581 = vlaneseq
    %v582 = vshrl.u32 %v581, 7
    %v583 = vsub.s32 0, %v582
    %v584 = vrot.slane %v579, %v583
    %585 = vmatprep.subr.mxu0 0.0
    %586 = vmatpush1.xpose.msra.mxu0 0.0
    %587 = vmatprep.subr.mxu0 0.0
    %588 = vmatpush1.xpose.msra.mxu0 0.0
    %589 = vmatprep.subr.mxu0 0.0
    %590 = vmatpush1.xpose.msra.mxu0 0.0
    %591 = vmatprep.subr.mxu0 0.0
    %592 = vmatpush1.xpose.msra.mxu0 0.0
    %593 = vmatprep.subr.mxu0 0.0
    %594 = vmatpush1.xpose.msra.mxu0 0.0
    %595 = vmatprep.subr.mxu0 0.0
    %596 = vmatpush1.xpose.msra.mxu0 0.0
    %597 = vmatprep.subr.mxu0 0.0
    %598 = vmatpush1.xpose.msra.mxu0 0.0
    %599 = vmatprep.subr.mxu0 0.0
    %600 = vmatpush1.xpose.msra.mxu0 0.0
    %601 = vmatprep.subr.mxu0 0.0
    %602 = vmatpush1.xpose.msra.mxu0 0.0
    %603 = vmatprep.subr.mxu0 0.0
    %604 = vmatpush1.xpose.msra.mxu0 0.0
    %605 = vmatprep.subr.mxu0 0.0
    %606 = vmatpush1.xpose.msra.mxu0 0.0
    %607 = vmatprep.subr.mxu0 0.0
    %608 = vmatpush1.xpose.msra.mxu0 0.0
    %609 = vmatprep.subr.mxu0 0.0
    %610 = vmatpush1.xpose.msra.mxu0 0.0
    %611 = vmatprep.subr.mxu0 0.0
    %612 = vmatpush1.xpose.msra.mxu0 0.0
    %613 = vmatprep.subr.mxu0 0.0
    %614 = vmatpush1.xpose.msra.mxu0 %v573
    %615 = vmatprep.subr.mxu0 0.0
    %616 = vmatpush1.xpose.msra.mxu0 %v572
    %617 = vmatprep.subr.mxu0 0.0
    %618 = vmatpush2.xpose.msra.mxu0 0.0
    %619 = vmatprep.subr.mxu0 0.0
    %620 = vmatpush2.xpose.msra.mxu0 0.0
    %621 = vmatprep.subr.mxu0 0.0
    %622 = vmatpush2.xpose.msra.mxu0 0.0
    %623 = vmatprep.subr.mxu0 0.0
    %624 = vmatpush2.xpose.msra.mxu0 0.0
    %625 = vmatprep.subr.mxu0 0.0
    %626 = vmatpush2.xpose.msra.mxu0 0.0
    %627 = vmatprep.subr.mxu0 0.0
    %628 = vmatpush2.xpose.msra.mxu0 0.0
    %629 = vmatprep.subr.mxu0 0.0
    %630 = vmatpush2.xpose.msra.mxu0 0.0
    %631 = vmatprep.subr.mxu0 0.0
    %632 = vmatpush2.xpose.msra.mxu0 0.0
    %633 = vmatprep.subr.mxu0 0.0
    %634 = vmatpush2.xpose.msra.mxu0 0.0
    %635 = vmatprep.subr.mxu0 0.0
    %636 = vmatpush2.xpose.msra.mxu0 0.0
    %637 = vmatprep.subr.mxu0 0.0
    %638 = vmatpush2.xpose.msra.mxu0 0.0
    %639 = vmatprep.subr.mxu0 0.0
    %640 = vmatpush2.xpose.msra.mxu0 0.0
    %641 = vmatprep.subr.mxu0 0.0
    %642 = vmatpush2.xpose.msra.mxu0 0.0
    %643 = vmatprep.subr.mxu0 0.0
    %644 = vmatpush2.xpose.msra.mxu0 0.0
    %645 = vmatprep.subr.mxu0 0.0
    %646 = vmatpush2.xpose.msra.mxu0 0.0
    %647 = vmatprep.subr.mxu0 0.0
    %648 = vmatpush2.xpose.msra.mxu0 0.0
    %649 = vmatprep.mubr.f32.mxu0 0.0
    %650 = vmatmul.mubr.f32.gmra.mxu0 %v574
    %v651 = vpop.f32.mrf.mxu0
    %v652 = vadd.f32 %v584, %v651
    %v653 = vpop.f32.mrf.mxu0
    %654 = vdwg.mxu0
    %vm655 = vcmask 122880
    %656 = vst.msk [vmem:[#allocation14] sm:$0x1] %vm655, %v652
    // Predicated region
    $region70: #{tpu_custom_call.1} parent=1 // pred_check
      _
    $region71: #{tpu_custom_call.1} parent=1 // pred_check_branch
      %658 = sbr.rel (0) target = $region73
    $region72: #{tpu_custom_call.1} parent=1 // pred_region
      %s660 = ssub.s32 16, 16
      %661 = vsyncadd [#allocation5], %s660
      %s663 = sshll.u32 [#allocation14], 4
      %s664 = int_to_ptr.vmem [resolvable:$true] %s663
      %666 = dma.vmem_to_hbm [thread:$0]  %s664, 16, %s11, [#allocation5]
    $region73: #{tpu_custom_call.1} parent=1 // pred_fallthru
      _
    // Predicated region
    $region74: #{tpu_custom_call.1} parent=1 // pred_check
      _
    $region75: #{tpu_custom_call.1} parent=1 // pred_check_branch
      %668 = sbr.rel (0) target = $region77
    $region76: #{tpu_custom_call.1} parent=1 // pred_region
      %669 = dma.done [#allocation5], 16
    $region77: #{tpu_custom_call.1} parent=1 // pred_fallthru
      _
    %670 = vsyncpa [#allocation4], 1
    %671 = vsyncpa [#allocation7], 1
    %672 = vsyncpa [#allocation10], 1
    %673 = vsyncpa [#allocation13], 1
    %674 = vsyncpa [#allocation5], 1

</llo_original>
